<compile_context>
chip_gen: v7x
topology: tpu7x:2x2x1
jax: 0.10.0
libtpu: 0.0.40
codegen_flags: <defaults>
</compile_context>

<pallas_src>
import functools

import jax
import jax.numpy as jnp
from jax.experimental import pallas as pl
from jax.experimental.pallas import tpu as pltpu


def _round_up(x, m):
    return (x + m - 1) // m * m


def _vmem_capacity_bytes():
    # Physical VMEM per TensorCore; conservative default (64 MiB == v7x, the
    # smallest of the target generations) if the query is unavailable.
    try:
        return int(pltpu.get_tpu_info().vmem_capacity_bytes)
    except Exception:
        return 64 * 1024 * 1024


# ---------------------------------------------------------------------------
# Fused kernel: patch extraction + projection in one pallas_call.
# ---------------------------------------------------------------------------
def _fused_patch_proj_kernel(x_ref, w_ref, b_ref, o_ref, *, r, nw, patch, chans):
    # x_ref: (C, r*P, W)     r patch rows of one batch element, W lane-dense
    # w_ref: (K, n_pad)      resident projection weight (compute dtype)
    # b_ref: (1, n_pad)      bias (f32)
    # o_ref: (r, nw, n_pad)
    P, C = patch, chans
    K = C * P * P
    x = x_ref[...]                              # (C, r*P, W)
    x = x.reshape(C, r, P, nw, P)               # split H->(r,P), W->(nw,P)
    x = jnp.transpose(x, (1, 3, 0, 2, 4))       # (r, nw, C, P, P)
    p = x.reshape(r * nw, K).astype(w_ref.dtype)
    acc = jnp.dot(p, w_ref[...], preferred_element_type=jnp.float32)
    acc = acc + b_ref[...]                      # f32 bias add
    o_ref[...] = acc.reshape(r, nw, -1).astype(o_ref.dtype)


def _fused_forward(image, w_pad, b_pad, *, patch_size, in_chans, r,
                   embed_dim, out_dtype, vmem_limit):
    B, C, H, W = image.shape
    P = patch_size
    nh, nw = H // P, W // P
    K = C * P * P
    n_pad = w_pad.shape[1]

    kernel = functools.partial(_fused_patch_proj_kernel,
                               r=r, nw=nw, patch=P, chans=C)

    flops = 2 * B * nh * nw * K * n_pad
    bytes_accessed = (image.size * image.dtype.itemsize
                      + w_pad.size * w_pad.dtype.itemsize
                      + b_pad.size * b_pad.dtype.itemsize
                      + B * nh * nw * n_pad * jnp.dtype(out_dtype).itemsize)

    out = pl.pallas_call(
        kernel,
        out_shape=jax.ShapeDtypeStruct((B, nh, nw, n_pad), out_dtype),
        grid_spec=pltpu.PrefetchScalarGridSpec(
            num_scalar_prefetch=0,
            grid=(B, nh // r),
            in_specs=[
                # r patch rows straight from the NCHW image: minor dim is W
                # (lane dense), second-minor r*P (multiple of 8 or full H).
                pl.BlockSpec((None, C, r * P, W), lambda b, i: (b, 0, i, 0)),
                # Full projection weight / bias: constant block index ->
                # fetched once and resident in VMEM for the whole grid.
                pl.BlockSpec((K, n_pad), lambda b, i: (0, 0)),
                pl.BlockSpec((1, n_pad), lambda b, i: (0, 0)),
            ],
            out_specs=pl.BlockSpec((None, r, nw, n_pad),
                                   lambda b, i: (b, i, 0, 0)),
        ),
        compiler_params=pltpu.CompilerParams(
            dimension_semantics=("parallel", "parallel"),
            vmem_limit_bytes=vmem_limit),
        cost_estimate=pl.CostEstimate(flops=flops, transcendentals=0,
                                      bytes_accessed=bytes_accessed),
    )(image, w_pad, b_pad)

    if n_pad != embed_dim:
        out = out[..., :embed_dim]
    return out.reshape(B, nh * nw, embed_dim)


# ---------------------------------------------------------------------------
# Fallback: JAX-side patchify (in matmul dtype) + plain projection kernel.
# ---------------------------------------------------------------------------
def _proj_kernel(x_ref, w_ref, b_ref, o_ref):
    acc = jnp.dot(x_ref[...], w_ref[...], preferred_element_type=jnp.float32)
    o_ref[...] = (acc + b_ref[...]).astype(o_ref.dtype)


def _unfused_forward(image, w_pad, b_pad, *, patch_size, embed_dim,
                     out_dtype, vmem_limit):
    B, C, H, W = image.shape
    P = patch_size
    nh, nw = H // P, W // P
    K = C * P * P
    n_pad = w_pad.shape[1]
    num_patches = nh * nw

    # Patchify on the JAX side, writing the intermediate directly in the
    # matmul dtype (halves the extra HBM pass the fallback pays for).
    patches = image.reshape(B, C, nh, P, nw, P)
    patches = patches.transpose(0, 2, 4, 1, 3, 5).reshape(B * num_patches, K)
    patches = patches.astype(w_pad.dtype)

    M = patches.shape[0]
    tm = min(512, _round_up(M, 8))
    Mp = _round_up(M, tm)
    if Mp != M:
        patches = jnp.pad(patches, ((0, Mp - M), (0, 0)))

    out = pl.pallas_call(
        _proj_kernel,
        out_shape=jax.ShapeDtypeStruct((Mp, n_pad), out_dtype),
        grid_spec=pltpu.PrefetchScalarGridSpec(
            num_scalar_prefetch=0,
            grid=(Mp // tm,),
            in_specs=[
                pl.BlockSpec((tm, K), lambda i: (i, 0)),
                pl.BlockSpec((K, n_pad), lambda i: (0, 0)),
                pl.BlockSpec((1, n_pad), lambda i: (0, 0)),
            ],
            out_specs=pl.BlockSpec((tm, n_pad), lambda i: (i, 0)),
        ),
        compiler_params=pltpu.CompilerParams(
            dimension_semantics=("parallel",),
            vmem_limit_bytes=vmem_limit),
    )(patches, w_pad, b_pad)

    return out[:M, :embed_dim].reshape(B, num_patches, embed_dim)


# ---------------------------------------------------------------------------
# Module
# ---------------------------------------------------------------------------
class PatchEmbeddings:
    """JAX/Pallas port of the PyTorch PatchEmbeddings module (patchify conv)."""

    def __init__(self, image_size=224, patch_size=16, embed_dim=768,
                 in_chans=3, key=None, dtype=jnp.float32,
                 matmul_dtype=jnp.bfloat16, out_dtype=None, impl="auto"):
        assert image_size % patch_size == 0, (
            f"Input dimensions {image_size}x{image_size} not divisible for "
            f"patch size {patch_size}")
        self.image_size = image_size
        self.patch_size = patch_size
        self.embed_dim = embed_dim
        self.in_chans = in_chans
        self.num_patches = (image_size // patch_size) ** 2
        self.matmul_dtype = matmul_dtype
        # Kernel is HBM-bound: default to bf16 output when the matmul is bf16.
        if out_dtype is None:
            out_dtype = (jnp.bfloat16
                         if jnp.dtype(matmul_dtype) == jnp.dtype(jnp.bfloat16)
                         else dtype)
        self.out_dtype = out_dtype

        if key is None:
            key = jax.random.PRNGKey(42)
        kw, kb = jax.random.split(key)
        # nn.Conv2d layout: weight (E, C, P, P), bias (E,)
        fan_in = in_chans * patch_size * patch_size
        bound = 1.0 / (fan_in ** 0.5)
        self.weight = jax.random.uniform(
            kw, (embed_dim, in_chans, patch_size, patch_size),
            minval=-bound, maxval=bound, dtype=dtype)
        self.bias = jax.random.uniform(
            kb, (embed_dim,), minval=-bound, maxval=bound, dtype=dtype)

        # (K, E) weight in MXU dtype, embed dim zero-padded to a multiple of
        # 128 so output stores are lane-dense.  Done once, outside the kernel.
        K = fan_in
        n_pad = _round_up(embed_dim, 128)
        w_proj = self.weight.reshape(embed_dim, K).T            # (K, E)
        b_proj = self.bias
        if n_pad != embed_dim:
            w_proj = jnp.pad(w_proj, ((0, 0), (0, n_pad - embed_dim)))
            b_proj = jnp.pad(b_proj, (0, n_pad - embed_dim))
        self._w_proj = w_proj.astype(matmul_dtype)
        self._b_proj = b_proj.reshape(1, n_pad).astype(jnp.float32)
        self._n_pad = n_pad

        # ---- static tiling config (per-generation VMEM aware) -------------
        vmem_cap = _vmem_capacity_bytes()
        self._vmem_limit = int(min(vmem_cap, 128 * 1024 * 1024) * 3 // 4)
        nh = nw = image_size // patch_size
        self._row_block = self._pick_row_block(
            nh=nh, nw=nw, chans=in_chans, patch=patch_size, width=image_size,
            k=K, n_pad=n_pad, budget=self._vmem_limit // 2)

        self._fused_fn = functools.partial(
            _fused_forward, patch_size=patch_size, in_chans=in_chans,
            r=self._row_block, embed_dim=embed_dim, out_dtype=self.out_dtype,
            vmem_limit=self._vmem_limit)
        self._unfused_fn = functools.partial(
            _unfused_forward, patch_size=patch_size, embed_dim=embed_dim,
            out_dtype=self.out_dtype, vmem_limit=self._vmem_limit)

        # Decide fused vs fallback ONCE, here, by AOT-compiling the fused
        # kernel (never a try/except inside a possibly-jitted forward).
        if impl == "auto":
            try:
                probe = jax.ShapeDtypeStruct(
                    (1, in_chans, image_size, image_size), dtype)
                jax.jit(self._fused_fn).lower(
                    probe, self._w_proj, self._b_proj).compile()
                impl = "fused"
            except Exception:
                # TODO(synk): drop the fallback once Mosaic's in-kernel patch
                # relayout (reshape + 5-D transpose) is confirmed on all
                # target generations.
                impl = "unfused"
        self.impl = impl

    @staticmethod
    def _pick_row_block(*, nh, nw, chans, patch, width, k, n_pad, budget):
        # Largest divisor r of nh such that:
        #  * r*patch is a legal second-minor block dim (mult of 8, or full H),
        #  * the per-step footprint (double-buffered image/out blocks,
        #    resident weight, relayout temporaries) fits the VMEM budget,
        #  * >=2 row blocks remain per image when nh allows it (pipelining,
        #    and megacore/2-TC sharding at batch=1 on v7x).
        def footprint(r):
            x_blk = chans * r * patch * width * 4       # image block (<=f32)
            w_blk = k * n_pad * 4                       # resident weight
            o_blk = r * nw * n_pad * 4                  # out block
            p_tmp = r * nw * k * 4                      # relayout temporaries
            return 2 * x_blk + 2 * w_blk + 2 * o_blk + 2 * p_tmp

        divs = [d for d in range(1, nh + 1) if nh % d == 0]
        ok = [d for d in divs
              if ((d * patch) % 8 == 0 or d == nh)
              and d * nw <= 2048
              and footprint(d) <= budget]
        if not ok:
            return nh
        multi = [d for d in ok if nh // d >= 2]
        return max(multi) if multi else max(ok)

    def __call__(self, image):
        B, C, H, W = image.shape
        assert H == self.image_size and W == self.image_size, (
            f"Input image size ({H}x{W}) doesn't match model "
            f"({self.image_size}x{self.image_size})")
        assert C == self.in_chans, (C, self.in_chans)
        if self.impl == "fused":
            return self._fused_fn(image, self._w_proj, self._b_proj)
        return self._unfused_fn(image, self._w_proj, self._b_proj)


def _reference(image, weight, bias, patch_size):
    # Plain-JAX reference: strided conv (NCHW, OIHW), then b c h w -> b (h w) c
    out = jax.lax.conv_general_dilated(
        image, weight,
        window_strides=(patch_size, patch_size),
        padding="VALID",
        dimension_numbers=("NCHW", "OIHW", "NCHW"),
        precision=jax.lax.Precision.HIGHEST)
    out = out + bias[None, :, None, None]
    B, E, h, w = out.shape
    return out.transpose(0, 2, 3, 1).reshape(B, h * w, E)


if __name__ == "__main__":
    # Small shapes: batch=2, in_chans=4, image 16x16, patch 4 -> 16 patches,
    # embed_dim=32.
    B, C, HW = 2, 4, 16
    P, E = 4, 32

    key = jax.random.PRNGKey(0)
    k_img, k_params = jax.random.split(key)
    image = jax.random.normal(k_img, (B, C, HW, HW), dtype=jnp.float32)

    # Default config: bf16 MXU inputs, f32 accumulate, bf16 output.
    module = PatchEmbeddings(image_size=HW, patch_size=P, embed_dim=E,
                             in_chans=C, key=k_params)
    out = jax.block_until_ready(module(image))
    ref = _reference(image, module.weight, module.bias, P)
    assert out.shape == (B, (HW // P) ** 2, E), out.shape
    err = float(jnp.max(jnp.abs(out.astype(jnp.float32) - ref)))
    assert err < 5e-2, err

    # f32-matmul / f32-output variant must match the conv reference tightly.
    module_f32 = PatchEmbeddings(image_size=HW, patch_size=P, embed_dim=E,
                                 in_chans=C, key=k_params,
                                 matmul_dtype=jnp.float32)
    out_f32 = jax.block_until_ready(module_f32(image))
    assert out_f32.dtype == jnp.float32
    err32 = float(jnp.max(jnp.abs(out_f32 - ref)))
    assert err32 < 2e-3, err32

    print("KERNEL_OK")
</pallas_src>

<mosaic_0001>
module attributes {stable_mosaic.version = 11 : i64} {
  func.func @_proj_kernel(%arg0: i32, %arg1: memref<32x64xbf16, #tpu.memory_space<vmem>>, %arg2: memref<64x128xbf16, #tpu.memory_space<vmem>>, %arg3: memref<1x128xf32, #tpu.memory_space<vmem>>, %arg4: memref<32x128xbf16, #tpu.memory_space<vmem>>) attributes {dimension_semantics = [#tpu.dimension_semantics<parallel>], iteration_bounds = array<i64: 1>, scalar_prefetch = 0 : i64, scratch_operands = 0 : i64, tpu.core_type = #tpu.core_type<tc>, window_params = [{transform_indices = @transform_0, window_bounds = array<i64: 32, 64>}, {pipeline_mode = #tpu.pipeline_mode<synchronous>, transform_indices = @transform_1, window_bounds = array<i64: 64, 128>}, {pipeline_mode = #tpu.pipeline_mode<synchronous>, transform_indices = @transform_2, window_bounds = array<i64: 1, 128>}, {transform_indices = @transform_3, window_bounds = array<i64: 32, 128>}]} {
    %c0 = arith.constant 0 : index
    %c0_0 = arith.constant 0 : index
    %0 = vector.load %arg1[%c0, %c0_0] : memref<32x64xbf16, #tpu.memory_space<vmem>>, vector<32x64xbf16>
    %c0_1 = arith.constant 0 : index
    %c0_2 = arith.constant 0 : index
    %1 = vector.load %arg2[%c0_1, %c0_2] : memref<64x128xbf16, #tpu.memory_space<vmem>>, vector<64x128xbf16>
    %cst = arith.constant dense<0.000000e+00> : vector<32x128xf32>
    %2 = tpu.matmul %0, %1, %cst {dimension_numbers = #tpu.dot_dimension_numbers<[1], [0], [0], [1], [0, 0, 1, 1], [], []>} : vector<32x64xbf16>, vector<64x128xbf16>, vector<32x128xf32> -> vector<32x128xf32>
    %c0_3 = arith.constant 0 : index
    %c0_4 = arith.constant 0 : index
    %3 = vector.load %arg3[%c0_3, %c0_4] : memref<1x128xf32, #tpu.memory_space<vmem>>, vector<1x128xf32>
    %4 = vector.broadcast %3 : vector<1x128xf32> to vector<32x128xf32>
    %5 = arith.addf %2, %4 : vector<32x128xf32>
    %6 = arith.truncf %5 : vector<32x128xf32> to vector<32x128xbf16>
    %c0_5 = arith.constant 0 : index
    %c0_6 = arith.constant 0 : index
    %7 = vector.load %arg4[%c0_5, %c0_6] : memref<32x128xbf16, #tpu.memory_space<vmem>>, vector<32x128xbf16>
    tpu.vector_store %arg4[%c0_5, %c0_6], %6 {strides = array<i32>} : memref<32x128xbf16, #tpu.memory_space<vmem>>, vector<32x128xbf16>,
    return
  }
  func.func @transform_0(%arg0: i32) -> (i32, i32) {
    %c0_i32 = arith.constant 0 : i32
    %c0_i32_0 = arith.constant 0 : i32
    return %arg0, %c0_i32 : i32, i32
  }
  func.func @transform_1(%arg0: i32) -> (i32, i32) {
    %c0_i32 = arith.constant 0 : i32
    %c0_i32_0 = arith.constant 0 : i32
    %c0_i32_1 = arith.constant 0 : i32
    return %c0_i32, %c0_i32_0 : i32, i32
  }
  func.func @transform_2(%arg0: i32) -> (i32, i32) {
    %c0_i32 = arith.constant 0 : i32
    %c0_i32_0 = arith.constant 0 : i32
    %c0_i32_1 = arith.constant 0 : i32
    return %c0_i32, %c0_i32_0 : i32, i32
  }
  func.func @transform_3(%arg0: i32) -> (i32, i32) {
    %c0_i32 = arith.constant 0 : i32
    %c0_i32_0 = arith.constant 0 : i32
    return %arg0, %c0_i32 : i32, i32
  }
}

</mosaic_0001>

<llo_original>
// kernel: tpu_custom_call.1
$region0: #{tpu_custom_call.1}
  #allocation0 [shape = 'u32[]', space=smem, size = 0x4, offset = 0x4, fixed_abs, tag = 'smem constant byte address 0x4 - core index']
  #allocation1 [shape = 'u32[144,128]{1,0:T(1,128)}', space=vmem, size = 0x12000, scoped, tag = 'internal scratch']
  %s0 = inlined_call_operand.hbm [shape: bf16[32,64], index: 0, kind: input, shape index: {}]
  %s1 = inlined_call_operand.hbm [shape: bf16[64,128], index: 1, kind: input, shape index: {}]
  %s2 = inlined_call_operand.vmem [shape: f32[1,128], index: 2, kind: input, shape index: {}]
  %s3 = inlined_call_operand.hbm [shape: bf16[32,128], index: 3, kind: output, shape index: {}]
  %s4 = sld [smem:[#allocation0]]
  $region30: #{tpu_custom_call.1} parent=0
    _
  %s6 = ssub.s32 1, %s4
  %s7 = scalar_select 0, %s6, %s4
  $region1: #{tpu_custom_call.1} parent=0
    #allocation2 [shape = 'u8[8192]{0}', space=vmem, size = 0x2000, scoped, tag = 'input window, operand 0, single buffered']
    #allocation3 [shape = 's32[1]{0}', space=sflag, size = 0x4, scoped, tag = 'scoped memory for tpu_custom_call.1']
    #allocation4 [shape = 's32[1]{0}', space=sflag, size = 0x4, scoped, tag = 'scoped memory for tpu_custom_call.1']
    #allocation5 [shape = 'u8[16384]{0}', space=vmem, size = 0x4000, scoped, tag = 'input window, operand 1, single buffered']
    #allocation6 [shape = 's32[1]{0}', space=sflag, size = 0x4, scoped, tag = 'scoped memory for tpu_custom_call.1']
    #allocation7 [shape = 'u8[8192]{0}', space=vmem, size = 0x2000, scoped, tag = 'output window, operand 0, single buffered']
    %8 = vsyncpa [#allocation3], 0
    %9 = vsyncpa [#allocation6], 0
    %10 = vsyncpa [#allocation4], 0
    // Predicated region
    $region2: #{tpu_custom_call.1} parent=1 // pred_check
      _
    $region3: #{tpu_custom_call.1} parent=1 // pred_check_branch
      %12 = sbr.rel (0) target = $region5
    $region4: #{tpu_custom_call.1} parent=1 // pred_region
      %s14 = ssub.s32 256, 256
      %15 = vsyncadd [#allocation3], %s14
      %s16 = sshll.u32 [#allocation2], 4
      %s17 = int_to_ptr.vmem [resolvable:$true] %s16
      %22 = dma.hbm_to_vmem [thread:$0]  %s0, 256, %s17, [#allocation3], 64, 64, 4
    $region5: #{tpu_custom_call.1} parent=1 // pred_fallthru
      _
    // Predicated region
    $region6: #{tpu_custom_call.1} parent=1 // pred_check
      _
    $region7: #{tpu_custom_call.1} parent=1 // pred_check_branch
      %24 = sbr.rel (0) target = $region9
    $region8: #{tpu_custom_call.1} parent=1 // pred_region
      %s26 = ssub.s32 512, 512
      %27 = vsyncadd [#allocation6], %s26
      %s28 = sshll.u32 [#allocation5], 4
      %s29 = int_to_ptr.vmem [resolvable:$true] %s28
      %34 = dma.hbm_to_vmem [thread:$0]  %s1, 512, %s29, [#allocation6], 64, 64, 4
    $region9: #{tpu_custom_call.1} parent=1 // pred_fallthru
      _
    // Predicated region
    $region10: #{tpu_custom_call.1} parent=1 // pred_check
      _
    $region11: #{tpu_custom_call.1} parent=1 // pred_check_branch
      %36 = sbr.rel (0) target = $region13
    $region12: #{tpu_custom_call.1} parent=1 // pred_region
      _
    $region13: #{tpu_custom_call.1} parent=1 // pred_fallthru
      _
    // Predicated region
    $region14: #{tpu_custom_call.1} parent=1 // pred_check
      _
    $region15: #{tpu_custom_call.1} parent=1 // pred_check_branch
      %38 = sbr.rel (0) target = $region17
    $region16: #{tpu_custom_call.1} parent=1 // pred_region
      %39 = dma.done [#allocation3], 256
    $region17: #{tpu_custom_call.1} parent=1 // pred_fallthru
      _
    // Predicated region
    $region18: #{tpu_custom_call.1} parent=1 // pred_check
      _
    $region19: #{tpu_custom_call.1} parent=1 // pred_check_branch
      %41 = sbr.rel (0) target = $region21
    $region20: #{tpu_custom_call.1} parent=1 // pred_region
      %42 = dma.done [#allocation6], 512
    $region21: #{tpu_custom_call.1} parent=1 // pred_fallthru
      _
    %v44 = vld [vmem:[#allocation2] sm:$0xf]
    %v45 = vld [vmem:[#allocation2 + $0x4] sm:$0xf]
    %v46 = vld [vmem:[#allocation2 + $0x8] sm:$0xf]
    %v47 = vld [vmem:[#allocation2 + $0xc] sm:$0xf]
    %v48 = vld [vmem:[#allocation5] sm:$0xf]
    %v49 = vld [vmem:[#allocation5 + $0x4] sm:$0xf]
    %v50 = vld [vmem:[#allocation5 + $0x8] sm:$0xf]
    %v51 = vld [vmem:[#allocation5 + $0xc] sm:$0xf]
    %v52 = vld [vmem:[#allocation5 + $0x10] sm:$0xf]
    %v53 = vld [vmem:[#allocation5 + $0x14] sm:$0xf]
    %v54 = vld [vmem:[#allocation5 + $0x18] sm:$0xf]
    %v55 = vld [vmem:[#allocation5 + $0x1c] sm:$0xf]
    %v56 = vld [vmem:[%s2] sm:$0x1]
    %v58 = vlaneseq
    %v59 = vshrl.u32 %v58, 7
    %v60 = vsub.s32 0, %v59
    %v61 = vrot.slane %v56, %v60
    %v67 = vunpack.c.l.b16 %v44
    %v68 = vunpack.c.l.b16 %v45
    %v69 = vunpack.c.l.b16 %v46
    %v70 = vunpack.c.l.b16 %v47
    %v71 = vpack.c.b16 %v68, %v67
    %v72 = vpack.c.b16 %v70, %v69
    %v81 = vunpack.c.l.b16 %v48
    %v82 = vunpack.c.l.b16 %v49
    %v83 = vunpack.c.l.b16 %v50
    %v84 = vunpack.c.l.b16 %v51
    %v85 = vunpack.c.l.b16 %v52
    %v86 = vunpack.c.l.b16 %v53
    %v87 = vunpack.c.l.b16 %v54
    %v88 = vunpack.c.l.b16 %v55
    %v89 = vpack.c.b16 %v82, %v81
    %v90 = vpack.c.b16 %v84, %v83
    %v91 = vpack.c.b16 %v86, %v85
    %v92 = vpack.c.b16 %v88, %v87
    %vm97 = vcmask 523264
    %v99 = vsel %vm97, %v71, 0
    %v102 = vsel %vm97, %v72, 0
    %104 = vmatprep.subr.bf16.mxu0 0
    %105 = vmatpush1.bf16.msra.mxu0 %v89
    %106 = vmatprep.subr.bf16.mxu0 0
    %107 = vmatpush1.bf16.msra.mxu0 %v90
    %108 = vmatprep.subr.bf16.mxu0 0
    %109 = vmatpush1.bf16.msra.mxu0 %v91
    %110 = vmatprep.subr.bf16.mxu0 0
    %111 = vmatpush1.bf16.msra.mxu0 %v92
    %112 = vmatprep.subr.bf16.mxu0 0
    %113 = vmatpush1.bf16.msra.mxu0 0
    %114 = vmatprep.subr.bf16.mxu0 0
    %115 = vmatpush1.bf16.msra.mxu0 0
    %116 = vmatprep.subr.bf16.mxu0 0
    %117 = vmatpush1.bf16.msra.mxu0 0
    %118 = vmatprep.subr.bf16.mxu0 0
    %119 = vmatpush1.bf16.msra.mxu0 0
    %120 = vmatprep.subr.bf16.mxu0 0
    %121 = vmatpush1.bf16.msra.mxu0 0
    %122 = vmatprep.subr.bf16.mxu0 0
    %123 = vmatpush1.bf16.msra.mxu0 0
    %124 = vmatprep.subr.bf16.mxu0 0
    %125 = vmatpush1.bf16.msra.mxu0 0
    %126 = vmatprep.subr.bf16.mxu0 0
    %127 = vmatpush1.bf16.msra.mxu0 0
    %128 = vmatprep.subr.bf16.mxu0 0
    %129 = vmatpush1.bf16.msra.mxu0 0
    %130 = vmatprep.subr.bf16.mxu0 0
    %131 = vmatpush1.bf16.msra.mxu0 0
    %132 = vmatprep.subr.bf16.mxu0 0
    %133 = vmatpush1.bf16.msra.mxu0 0
    %134 = vmatprep.subr.bf16.mxu0 0
    %135 = vmatpush1.bf16.msra.mxu0 0
    %136 = vmatprep.mubr.bf16.mxu0 0
    %137 = vmatmul.mubr.bf16.gmra.mrb[0].mxu0 %v99
    %v138 = vpop.f32.mrb[0].mxu0
    %v139 = vadd.f32 %v61, %v138
    %v140 = vpop.f32.mrb[0].mxu0
    %v141 = vpop.f32.mrb[0].mxu0
    %v142 = vadd.f32 %v61, %v141
    %v143 = vpop.f32.mrb[0].mxu0
    %144 = vmatprep.mubr.bf16.mxu0 0
    %145 = vmatmul.mubr.bf16.gmra.mrb[0].mxu0 %v102
    %v146 = vpop.f32.mrb[0].mxu0
    %v147 = vadd.f32 %v61, %v146
    %v148 = vpop.f32.mrb[0].mxu0
    %v149 = vpop.f32.mrb[0].mxu0
    %v150 = vadd.f32 %v61, %v149
    %v151 = vpop.f32.mrb[0].mxu0
    %152 = vdwg.mxu0
    %v153 = vpack.c.bf16 %v142, %v139
    %v154 = vpack.c.bf16 %v150, %v147
    %v157 = vunpack.c.l.b16 %v153
    %v158 = vunpack.c.h.b16 %v153
    %v159 = vunpack.c.l.b16 %v154
    %v160 = vunpack.c.h.b16 %v154
    %v161 = vpack.c.b16 %v157, %v157
    %v162 = vpack.c.b16 %v158, %v158
    %v163 = vpack.c.b16 %v159, %v159
    %v164 = vpack.c.b16 %v160, %v160
    %169 = vst [vmem:[#allocation7] sm:$0xf] %v161
    %170 = vst [vmem:[#allocation7 + $0x4] sm:$0xf] %v162
    %171 = vst [vmem:[#allocation7 + $0x8] sm:$0xf] %v163
    %172 = vst [vmem:[#allocation7 + $0xc] sm:$0xf] %v164
    // Predicated region
    $region22: #{tpu_custom_call.1} parent=1 // pred_check
      _
    $region23: #{tpu_custom_call.1} parent=1 // pred_check_branch
      %174 = sbr.rel (0) target = $region25
    $region24: #{tpu_custom_call.1} parent=1 // pred_region
      %s176 = ssub.s32 256, 256
      %177 = vsyncadd [#allocation4], %s176
      %s178 = sshll.u32 [#allocation7], 4
      %s179 = int_to_ptr.vmem [resolvable:$true] %s178
      %184 = dma.vmem_to_hbm [thread:$0]  %s179, 256, %s3, [#allocation4], 64, 64, 4
    $region25: #{tpu_custom_call.1} parent=1 // pred_fallthru
      _
    // Predicated region
    $region26: #{tpu_custom_call.1} parent=1 // pred_check
      _
    $region27: #{tpu_custom_call.1} parent=1 // pred_check_branch
      %186 = sbr.rel (0) target = $region29
    $region28: #{tpu_custom_call.1} parent=1 // pred_region
      %187 = dma.done [#allocation4], 256
    $region29: #{tpu_custom_call.1} parent=1 // pred_fallthru
      _
    %188 = vsyncpa [#allocation3], 1
    %189 = vsyncpa [#allocation6], 1
    %190 = vsyncpa [#allocation4], 1

</llo_original>
